<compile_context>
chip_gen: v7x
topology: tpu7x:2x2x1
jax: 0.10.0
libtpu: 0.0.40
codegen_flags: <defaults>
</compile_context>

<pallas_src>
import functools
import math

import jax
import jax.numpy as jnp
from jax.experimental import pallas as pl
from jax.experimental.pallas import tpu as pltpu


def _round_up(x: int, m: int) -> int:
    return (x + m - 1) // m * m


def _fc_gaussian_sample_kernel(x_ref, w_ref, b_ref, eps_ref, mu_ref, lv_ref, samp_ref):
    # One fused MXU matmul for both projections:
    #   y = x @ [W_mu | W_logvar] + [b_mu | b_logvar]
    # Cast x to the weight dtype (no-op for f32; enables a bf16 MXU path on v6e/v7x if the
    # fused weights are prepared in bf16).  Accumulate in f32.
    y = jnp.dot(x_ref[...].astype(w_ref.dtype), w_ref[...],
                preferred_element_type=jnp.float32) + b_ref[...]

    d = mu_ref.shape[-1]            # padded output dim (multiple of 128) -> lane-aligned slices
    mu = y[:, :d]
    lv = y[:, d:]

    std = jnp.exp(0.5 * lv)                                  # EUP
    samp = eps_ref[...].astype(jnp.float32) * std + mu       # VPU FMA

    mu_ref[...] = mu.astype(mu_ref.dtype)
    lv_ref[...] = lv.astype(lv_ref.dtype)
    samp_ref[...] = samp.astype(samp_ref.dtype)


def fuse_fc_gaussian_params(w_mu, b_mu, w_logvar, b_logvar, *, param_dtype=None):
    """Build the fused, 128-lane-padded weight/bias ONCE at parameter-setup time.

    Args:
      w_mu, w_logvar: [input_dim, output_dim]  (pre-transposed vs. torch Linear.weight)
      b_mu, b_logvar: [output_dim]
      param_dtype: optional storage/MXU dtype for the fused weight (e.g. jnp.bfloat16 on
        v6e/v7x); defaults to w_mu.dtype.

    Returns:
      w_cat: [input_dim, 2*D_pad], b_cat: [1, 2*D_pad] (f32), with D_pad = round_up(D, 128).
    """
    in_dim, d = w_mu.shape
    dp = _round_up(d, 128)
    dtype = param_dtype or w_mu.dtype

    w_cat = jnp.zeros((in_dim, 2 * dp), dtype)
    w_cat = w_cat.at[:, :d].set(w_mu.astype(dtype))
    w_cat = w_cat.at[:, dp:dp + d].set(w_logvar.astype(dtype))

    b_cat = jnp.zeros((1, 2 * dp), jnp.float32)
    b_cat = b_cat.at[0, :d].set(b_mu.astype(jnp.float32))
    b_cat = b_cat.at[0, dp:dp + d].set(b_logvar.astype(jnp.float32))
    return w_cat, b_cat


@functools.partial(jax.jit, static_argnames=("block_b",))
def fc_gaussian_sample(x, w_cat, b_cat, eps, *, block_b=256):
    """Pallas implementation of FcGaussianSample.forward.

    Args:
      x:     [B, input_dim]
      w_cat: [input_dim, 2*D_pad]   fused/padded weights from fuse_fc_gaussian_params
      b_cat: [1, 2*D_pad]           fused/padded bias
      eps:   [B, output_dim]        N(0,1) noise (torch.randn_like equivalent; caller
                                    threads a fresh PRNG key per call)
      block_b: B-tile size (use ~256-1024 at real batch sizes).

    Returns:
      (mu, logvar, sample), each [B, output_dim].
    """
    B, K = x.shape
    out_dim = eps.shape[1]
    two_dp = w_cat.shape[1]
    dp = two_dp // 2

    # B tiling: tm multiple of 8 (sublane), B padded up to a multiple of tm.
    tm = min(block_b, _round_up(B, 8))
    b_pad = _round_up(B, tm)
    grid_b = b_pad // tm

    x_p = x if b_pad == B else jnp.pad(x, ((0, b_pad - B), (0, 0)))
    eps_p = eps.astype(x.dtype)
    if b_pad != B or dp != out_dim:
        eps_p = jnp.pad(eps_p, ((0, b_pad - B), (0, dp - out_dim)))

    itemsize = jnp.dtype(x.dtype).itemsize
    w_bytes = w_cat.size * jnp.dtype(w_cat.dtype).itemsize + b_cat.size * 4
    tile_bytes = (tm * K + tm * dp) * itemsize + 3 * tm * dp * itemsize
    # Double-buffered tiles + resident weights + slack; clamp for v7x's 64 MiB VMEM.
    vmem_limit = int(min(max(2 * (tile_bytes + w_bytes) + (4 << 20), 16 << 20), 48 << 20))

    cost = pl.CostEstimate(
        flops=2 * b_pad * K * two_dp,
        transcendentals=b_pad * dp,                       # exp(0.5*logvar)
        bytes_accessed=(x_p.size + eps_p.size + 3 * b_pad * dp) * itemsize + w_bytes,
    )

    # TODO(synk): for large input_dim, add a trailing "arbitrary" K grid axis with an f32
    # VMEM accumulator (pl.when init/finalize) instead of loading all of K at once.
    mu_p, lv_p, samp_p = pl.pallas_call(
        _fc_gaussian_sample_kernel,
        out_shape=[jax.ShapeDtypeStruct((b_pad, dp), x.dtype)] * 3,
        grid_spec=pltpu.PrefetchScalarGridSpec(
            num_scalar_prefetch=0,
            grid=(grid_b,),
            in_specs=[
                pl.BlockSpec((tm, K), lambda i: (i, 0)),       # x tile
                pl.BlockSpec((K, two_dp), lambda i: (0, 0)),   # fused weights (VMEM-resident)
                pl.BlockSpec((1, two_dp), lambda i: (0, 0)),   # fused bias   (VMEM-resident)
                pl.BlockSpec((tm, dp), lambda i: (i, 0)),      # eps tile
            ],
            out_specs=[pl.BlockSpec((tm, dp), lambda i: (i, 0))] * 3,
        ),
        compiler_params=pltpu.CompilerParams(
            dimension_semantics=("parallel",),   # shard B tiles across TCs on v7x
            vmem_limit_bytes=vmem_limit,
        ),
        cost_estimate=cost,
    )(x_p, w_cat, b_cat, eps_p)

    # With D already a multiple of 128 and B a multiple of tm these slices are no-ops.
    mu = mu_p[:B, :out_dim]
    logvar = lv_p[:B, :out_dim]
    sample = samp_p[:B, :out_dim]
    return mu, logvar, sample


if __name__ == "__main__":
    # Small shapes consistent with FcGaussianSample(input_dim=32, output_dim=16).
    B, input_dim, output_dim = 8, 32, 16

    key = jax.random.PRNGKey(0)
    kx, kwm, kbm, kwl, kbl, keps = jax.random.split(key, 6)

    # Deterministic param init mimicking nn.Linear default: U(-1/sqrt(in), 1/sqrt(in)).
    bound = 1.0 / math.sqrt(input_dim)
    x = jax.random.normal(kx, (B, input_dim), dtype=jnp.float32)
    w_mu = jax.random.uniform(kwm, (input_dim, output_dim), jnp.float32, -bound, bound)
    b_mu = jax.random.uniform(kbm, (output_dim,), jnp.float32, -bound, bound)
    w_logvar = jax.random.uniform(kwl, (input_dim, output_dim), jnp.float32, -bound, bound)
    b_logvar = jax.random.uniform(kbl, (output_dim,), jnp.float32, -bound, bound)

    # Reparameterization noise (torch.randn_like equivalent), fresh per call.
    eps = jax.random.normal(keps, (B, output_dim), dtype=jnp.float32)

    # Fuse + pad the parameters ONCE (not per forward call).
    w_cat, b_cat = fuse_fc_gaussian_params(w_mu, b_mu, w_logvar, b_logvar)

    mu, logvar, sample = fc_gaussian_sample(x, w_cat, b_cat, eps)
    jax.block_until_ready((mu, logvar, sample))

    # Reference (pure JAX, f32).
    mu_ref = x @ w_mu + b_mu
    lv_ref = x @ w_logvar + b_logvar
    samp_ref = eps * jnp.exp(0.5 * lv_ref) + mu_ref

    assert mu.shape == (B, output_dim)
    assert logvar.shape == (B, output_dim)
    assert sample.shape == (B, output_dim)
    assert jnp.allclose(mu, mu_ref, atol=1e-5, rtol=1e-5)
    assert jnp.allclose(logvar, lv_ref, atol=1e-5, rtol=1e-5)
    assert jnp.allclose(sample, samp_ref, atol=1e-5, rtol=1e-5)

    print("KERNEL_OK")
</pallas_src>

<mosaic_0001>
module attributes {stable_mosaic.version = 11 : i64} {
  func.func @_fc_gaussian_sample_kernel(%arg0: i32, %arg1: memref<8x32xf32, #tpu.memory_space<vmem>>, %arg2: memref<32x256xf32, #tpu.memory_space<vmem>>, %arg3: memref<1x256xf32, #tpu.memory_space<vmem>>, %arg4: memref<8x128xf32, #tpu.memory_space<vmem>>, %arg5: memref<8x128xf32, #tpu.memory_space<vmem>>, %arg6: memref<8x128xf32, #tpu.memory_space<vmem>>, %arg7: memref<8x128xf32, #tpu.memory_space<vmem>>) attributes {dimension_semantics = [#tpu.dimension_semantics<parallel>], iteration_bounds = array<i64: 1>, scalar_prefetch = 0 : i64, scratch_operands = 0 : i64, tpu.core_type = #tpu.core_type<tc>, window_params = [{transform_indices = @transform_0, window_bounds = array<i64: 8, 32>}, {pipeline_mode = #tpu.pipeline_mode<synchronous>, transform_indices = @transform_1, window_bounds = array<i64: 32, 256>}, {pipeline_mode = #tpu.pipeline_mode<synchronous>, transform_indices = @transform_2, window_bounds = array<i64: 1, 256>}, {transform_indices = @transform_3, window_bounds = array<i64: 8, 128>}, {transform_indices = @transform_4, window_bounds = array<i64: 8, 128>}, {transform_indices = @transform_5, window_bounds = array<i64: 8, 128>}, {transform_indices = @transform_6, window_bounds = array<i64: 8, 128>}]} {
    %c0 = arith.constant 0 : index
    %c0_0 = arith.constant 0 : index
    %0 = vector.load %arg1[%c0, %c0_0] : memref<8x32xf32, #tpu.memory_space<vmem>>, vector<8x32xf32>
    %c0_1 = arith.constant 0 : index
    %c0_2 = arith.constant 0 : index
    %1 = vector.load %arg2[%c0_1, %c0_2] : memref<32x256xf32, #tpu.memory_space<vmem>>, vector<32x256xf32>
    %cst = arith.constant dense<0.000000e+00> : vector<8x256xf32>
    %2 = tpu.matmul %0, %1, %cst {dimension_numbers = #tpu.dot_dimension_numbers<[1], [0], [0], [1], [0, 0, 1, 1], [], []>} : vector<8x32xf32>, vector<32x256xf32>, vector<8x256xf32> -> vector<8x256xf32>
    %c0_3 = arith.constant 0 : index
    %c0_4 = arith.constant 0 : index
    %3 = vector.load %arg3[%c0_3, %c0_4] : memref<1x256xf32, #tpu.memory_space<vmem>>, vector<1x256xf32>
    %4 = vector.broadcast %3 : vector<1x256xf32> to vector<8x256xf32>
    %5 = arith.addf %2, %4 : vector<8x256xf32>
    %6 = vector.extract_strided_slice %5 {offsets = [0, 0], sizes = [8, 128], strides = [1, 1]} : vector<8x256xf32> to vector<8x128xf32>
    %7 = vector.extract_strided_slice %5 {offsets = [0, 128], sizes = [8, 128], strides = [1, 1]} : vector<8x256xf32> to vector<8x128xf32>
    %cst_5 = arith.constant 5.000000e-01 : f32
    %8 = vector.broadcast %cst_5 : f32 to vector<8x128xf32>
    %9 = arith.mulf %8, %7 : vector<8x128xf32>
    %10 = math.exp %9 : vector<8x128xf32>
    %c0_6 = arith.constant 0 : index
    %c0_7 = arith.constant 0 : index
    %11 = vector.load %arg4[%c0_6, %c0_7] : memref<8x128xf32, #tpu.memory_space<vmem>>, vector<8x128xf32>
    %12 = arith.mulf %11, %10 : vector<8x128xf32>
    %13 = arith.addf %12, %6 : vector<8x128xf32>
    %c0_8 = arith.constant 0 : index
    %c0_9 = arith.constant 0 : index
    %14 = vector.load %arg5[%c0_8, %c0_9] : memref<8x128xf32, #tpu.memory_space<vmem>>, vector<8x128xf32>
    tpu.vector_store %arg5[%c0_8, %c0_9], %6 {strides = array<i32>} : memref<8x128xf32, #tpu.memory_space<vmem>>, vector<8x128xf32>,
    %c0_10 = arith.constant 0 : index
    %c0_11 = arith.constant 0 : index
    %15 = vector.load %arg6[%c0_10, %c0_11] : memref<8x128xf32, #tpu.memory_space<vmem>>, vector<8x128xf32>
    tpu.vector_store %arg6[%c0_10, %c0_11], %7 {strides = array<i32>} : memref<8x128xf32, #tpu.memory_space<vmem>>, vector<8x128xf32>,
    %c0_12 = arith.constant 0 : index
    %c0_13 = arith.constant 0 : index
    %16 = vector.load %arg7[%c0_12, %c0_13] : memref<8x128xf32, #tpu.memory_space<vmem>>, vector<8x128xf32>
    tpu.vector_store %arg7[%c0_12, %c0_13], %13 {strides = array<i32>} : memref<8x128xf32, #tpu.memory_space<vmem>>, vector<8x128xf32>,
    return
  }
  func.func @transform_0(%arg0: i32) -> (i32, i32) {
    %c0_i32 = arith.constant 0 : i32
    %c0_i32_0 = arith.constant 0 : i32
    return %arg0, %c0_i32 : i32, i32
  }
  func.func @transform_1(%arg0: i32) -> (i32, i32) {
    %c0_i32 = arith.constant 0 : i32
    %c0_i32_0 = arith.constant 0 : i32
    %c0_i32_1 = arith.constant 0 : i32
    return %c0_i32, %c0_i32_0 : i32, i32
  }
  func.func @transform_2(%arg0: i32) -> (i32, i32) {
    %c0_i32 = arith.constant 0 : i32
    %c0_i32_0 = arith.constant 0 : i32
    %c0_i32_1 = arith.constant 0 : i32
    return %c0_i32, %c0_i32_0 : i32, i32
  }
  func.func @transform_3(%arg0: i32) -> (i32, i32) {
    %c0_i32 = arith.constant 0 : i32
    %c0_i32_0 = arith.constant 0 : i32
    return %arg0, %c0_i32 : i32, i32
  }
  func.func @transform_4(%arg0: i32) -> (i32, i32) {
    %c0_i32 = arith.constant 0 : i32
    %c0_i32_0 = arith.constant 0 : i32
    return %arg0, %c0_i32 : i32, i32
  }
  func.func @transform_5(%arg0: i32) -> (i32, i32) {
    %c0_i32 = arith.constant 0 : i32
    %c0_i32_0 = arith.constant 0 : i32
    return %arg0, %c0_i32 : i32, i32
  }
  func.func @transform_6(%arg0: i32) -> (i32, i32) {
    %c0_i32 = arith.constant 0 : i32
    %c0_i32_0 = arith.constant 0 : i32
    return %arg0, %c0_i32 : i32, i32
  }
}

</mosaic_0001>

<llo_original>
// kernel: fc_gaussian_sample.1
$region0: #{fc_gaussian_sample.1}
  #allocation0 [shape = 'u32[]', space=smem, size = 0x4, offset = 0x4, fixed_abs, tag = 'smem constant byte address 0x4 - core index']
  #allocation1 [shape = 'u32[144,128]{1,0:T(1,128)}', space=vmem, size = 0x12000, scoped, tag = 'internal scratch']
  %s0 = inlined_call_operand.vmem [shape: f32[8,32], index: 0, kind: input, shape index: {}]
  %s1 = inlined_call_operand.hbm [shape: f32[32,256], index: 1, kind: input, shape index: {}]
  %s2 = inlined_call_operand.vmem [shape: f32[1,256], index: 2, kind: input, shape index: {}]
  %s3 = inlined_call_operand.vmem [shape: f32[8,128], index: 3, kind: input, shape index: {}]
  %s4 = inlined_call_operand.hbm [shape: f32[8,128], index: 4, kind: output, shape index: {0}]
  %s5 = inlined_call_operand.hbm [shape: f32[8,128], index: 5, kind: output, shape index: {1}]
  %s6 = inlined_call_operand.hbm [shape: f32[8,128], index: 6, kind: output, shape index: {2}]
  %7 = xla_tuple %s4, %s5, %s6
  %s8 = sld [smem:[#allocation0]]
  $region46: #{fc_gaussian_sample.1} parent=0
    _
  %s10 = ssub.s32 1, %s8
  %s11 = scalar_select 0, %s10, %s8
  $region1: #{fc_gaussian_sample.1} parent=0
    #allocation2 [shape = 'u8[32768]{0}', space=vmem, size = 0x8000, scoped, tag = 'input window, operand 1, single buffered']
    #allocation3 [shape = 's32[1]{0}', space=sflag, size = 0x4, scoped, tag = 'scoped memory for fc_gaussian_sample.1']
    #allocation4 [shape = 's32[1]{0}', space=sflag, size = 0x4, scoped, tag = 'scoped memory for fc_gaussian_sample.1']
    #allocation5 [shape = 'u8[4096]{0}', space=vmem, size = 0x1000, scoped, tag = 'output window, operand 0, single buffered']
    #allocation6 [shape = 'u8[4096]{0}', space=vmem, size = 0x1000, scoped, tag = 'output window, operand 1, single buffered']
    #allocation7 [shape = 's32[1]{0}', space=sflag, size = 0x4, scoped, tag = 'scoped memory for fc_gaussian_sample.1']
    #allocation8 [shape = 'u8[4096]{0}', space=vmem, size = 0x1000, scoped, tag = 'output window, operand 2, single buffered']
    %12 = vsyncpa [#allocation3], 0
    %13 = vsyncpa [#allocation4], 0
    %14 = vsyncpa [#allocation7], 0
    // Predicated region
    $region2: #{fc_gaussian_sample.1} parent=1 // pred_check
      _
    $region3: #{fc_gaussian_sample.1} parent=1 // pred_check_branch
      %16 = sbr.rel (0) target = $region5
    $region4: #{fc_gaussian_sample.1} parent=1 // pred_region
      _
    $region5: #{fc_gaussian_sample.1} parent=1 // pred_fallthru
      _
    // Predicated region
    $region6: #{fc_gaussian_sample.1} parent=1 // pred_check
      _
    $region7: #{fc_gaussian_sample.1} parent=1 // pred_check_branch
      %18 = sbr.rel (0) target = $region9
    $region8: #{fc_gaussian_sample.1} parent=1 // pred_region
      %s20 = ssub.s32 1024, 1024
      %21 = vsyncadd [#allocation3], %s20
      %s22 = sshll.u32 [#allocation2], 4
      %s23 = int_to_ptr.vmem [resolvable:$true] %s22
      %28 = dma.hbm_to_vmem [thread:$0]  %s1, 1024, %s23, [#allocation3], 256, 256, 16
    $region9: #{fc_gaussian_sample.1} parent=1 // pred_fallthru
      _
    // Predicated region
    $region10: #{fc_gaussian_sample.1} parent=1 // pred_check
      _
    $region11: #{fc_gaussian_sample.1} parent=1 // pred_check_branch
      %30 = sbr.rel (0) target = $region13
    $region12: #{fc_gaussian_sample.1} parent=1 // pred_region
      _
    $region13: #{fc_gaussian_sample.1} parent=1 // pred_fallthru
      _
    // Predicated region
    $region14: #{fc_gaussian_sample.1} parent=1 // pred_check
      _
    $region15: #{fc_gaussian_sample.1} parent=1 // pred_check_branch
      %32 = sbr.rel (0) target = $region17
    $region16: #{fc_gaussian_sample.1} parent=1 // pred_region
      _
    $region17: #{fc_gaussian_sample.1} parent=1 // pred_fallthru
      _
    // Predicated region
    $region18: #{fc_gaussian_sample.1} parent=1 // pred_check
      _
    $region19: #{fc_gaussian_sample.1} parent=1 // pred_check_branch
      %34 = sbr.rel (0) target = $region21
    $region20: #{fc_gaussian_sample.1} parent=1 // pred_region
      %35 = dma.done [#allocation3], 1024
    $region21: #{fc_gaussian_sample.1} parent=1 // pred_fallthru
      _
    %v36 = vld [vmem:[%s0] sm:$0xff]
    %v37 = vld [vmem:[#allocation2] sm:$0xff]
    %v38 = vld [vmem:[#allocation2 + $0x8] sm:$0xff]
    %v39 = vld [vmem:[#allocation2 + $0x10] sm:$0xff]
    %v40 = vld [vmem:[#allocation2 + $0x18] sm:$0xff]
    %v41 = vld [vmem:[#allocation2 + $0x20] sm:$0xff]
    %v42 = vld [vmem:[#allocation2 + $0x28] sm:$0xff]
    %v43 = vld [vmem:[#allocation2 + $0x30] sm:$0xff]
    %v44 = vld [vmem:[#allocation2 + $0x38] sm:$0xff]
    %v45 = vld [vmem:[%s2] sm:$0x3]
    %v47 = vlaneseq
    %v48 = vshrl.u32 %v47, 7
    %v49 = vsub.s32 0, %v48
    %v50 = vrot.slane %v45, %v49
    %v51 = vlaneseq
    %v52 = vshrl.u32 %v51, 7
    %v53 = vsub.s32 1, %v52
    %v54 = vrot.slane %v45, %v53
    %vm57 = vcmask 261120
    %v59 = vsel %vm57, %v36, 0
    %61 = vmatprep.subr.mxu0 %v38
    %62 = vmatpush1.msra.mxu0 %v37
    %63 = vmatprep.subr.mxu0 %v40
    %64 = vmatpush1.msra.mxu0 %v39
    %65 = vmatprep.subr.mxu0 %v42
    %66 = vmatpush1.msra.mxu0 %v41
    %67 = vmatprep.subr.mxu0 %v44
    %68 = vmatpush1.msra.mxu0 %v43
    %69 = vmatprep.subr.mxu0 0.0
    %70 = vmatpush1.msra.mxu0 0.0
    %71 = vmatprep.subr.mxu0 0.0
    %72 = vmatpush1.msra.mxu0 0.0
    %73 = vmatprep.subr.mxu0 0.0
    %74 = vmatpush1.msra.mxu0 0.0
    %75 = vmatprep.subr.mxu0 0.0
    %76 = vmatpush1.msra.mxu0 0.0
    %77 = vmatprep.subr.mxu0 0.0
    %78 = vmatpush1.msra.mxu0 0.0
    %79 = vmatprep.subr.mxu0 0.0
    %80 = vmatpush1.msra.mxu0 0.0
    %81 = vmatprep.subr.mxu0 0.0
    %82 = vmatpush1.msra.mxu0 0.0
    %83 = vmatprep.subr.mxu0 0.0
    %84 = vmatpush1.msra.mxu0 0.0
    %85 = vmatprep.subr.mxu0 0.0
    %86 = vmatpush1.msra.mxu0 0.0
    %87 = vmatprep.subr.mxu0 0.0
    %88 = vmatpush1.msra.mxu0 0.0
    %89 = vmatprep.subr.mxu0 0.0
    %90 = vmatpush1.msra.mxu0 0.0
    %91 = vmatprep.subr.mxu0 0.0
    %92 = vmatpush1.msra.mxu0 0.0
    %93 = vmatprep.subr.mxu0 0.0
    %94 = vmatpush1.msra.mxu0 0.0
    %95 = vmatprep.subr.mxu0 0.0
    %96 = vmatpush1.msra.mxu0 0.0
    %97 = vmatprep.subr.mxu0 0.0
    %98 = vmatpush1.msra.mxu0 0.0
    %99 = vmatprep.subr.mxu0 0.0
    %100 = vmatpush1.msra.mxu0 0.0
    %101 = vmatprep.subr.mxu0 0.0
    %102 = vmatpush1.msra.mxu0 0.0
    %103 = vmatprep.subr.mxu0 0.0
    %104 = vmatpush1.msra.mxu0 0.0
    %105 = vmatprep.subr.mxu0 0.0
    %106 = vmatpush1.msra.mxu0 0.0
    %107 = vmatprep.subr.mxu0 0.0
    %108 = vmatpush1.msra.mxu0 0.0
    %109 = vmatprep.subr.mxu0 0.0
    %110 = vmatpush1.msra.mxu0 0.0
    %111 = vmatprep.subr.mxu0 0.0
    %112 = vmatpush1.msra.mxu0 0.0
    %113 = vmatprep.subr.mxu0 0.0
    %114 = vmatpush1.msra.mxu0 0.0
    %115 = vmatprep.subr.mxu0 0.0
    %116 = vmatpush1.msra.mxu0 0.0
    %117 = vmatprep.subr.mxu0 0.0
    %118 = vmatpush1.msra.mxu0 0.0
    %119 = vmatprep.subr.mxu0 0.0
    %120 = vmatpush1.msra.mxu0 0.0
    %121 = vmatprep.subr.mxu0 0.0
    %122 = vmatpush1.msra.mxu0 0.0
    %123 = vmatprep.subr.mxu0 0.0
    %124 = vmatpush1.msra.mxu0 0.0
    %125 = vmatprep.mubr.f32.mxu0 0.0
    %126 = vmatmul.mubr.f32.gmra.mrb[0].mxu0 %v59
    %v127 = vpop.f32.mrb[0].mxu0
    %v128 = vadd.f32 %v50, %v127
    %v129 = vpop.f32.mrb[0].mxu0
    %v130 = vadd.f32 %v54, %v129
    %131 = vdwg.mxu0
    %v132 = vmul.f32 %v130, 0.5
    %v133 = vmul.f32 %v132, 1.442695
    %v134 = vpow.pop %v133
    %v135 = vld [vmem:[%s3] sm:$0xff]
    %v136 = vmul.f32 %v135, %v134
    %v137 = vadd.f32 %v136, %v128
    %138 = vst [vmem:[#allocation5] sm:$0xff] %v128
    %139 = vst [vmem:[#allocation6] sm:$0xff] %v130
    %140 = vst [vmem:[#allocation8] sm:$0xff] %v137
    // Predicated region
    $region22: #{fc_gaussian_sample.1} parent=1 // pred_check
      _
    $region23: #{fc_gaussian_sample.1} parent=1 // pred_check_branch
      %142 = sbr.rel (0) target = $region25
    $region24: #{fc_gaussian_sample.1} parent=1 // pred_region
      %s144 = ssub.s32 128, 128
      %145 = vsyncadd [#allocation4], %s144
      %s147 = sshll.u32 [#allocation5], 4
      %s148 = int_to_ptr.vmem [resolvable:$true] %s147
      %150 = dma.vmem_to_hbm [thread:$0]  %s148, 128, %s4, [#allocation4]
    $region25: #{fc_gaussian_sample.1} parent=1 // pred_fallthru
      _
    // Predicated region
    $region26: #{fc_gaussian_sample.1} parent=1 // pred_check
      _
    $region27: #{fc_gaussian_sample.1} parent=1 // pred_check_branch
      %152 = sbr.rel (0) target = $region29
    $region28: #{fc_gaussian_sample.1} parent=1 // pred_region
      %s154 = ssub.s32 128, 128
      %155 = vsyncadd [#allocation7], %s154
      %s157 = sshll.u32 [#allocation6], 4
      %s158 = int_to_ptr.vmem [resolvable:$true] %s157
      %160 = dma.vmem_to_hbm [thread:$0]  %s158, 128, %s5, [#allocation7]
    $region29: #{fc_gaussian_sample.1} parent=1 // pred_fallthru
      _
    // Predicated region
    $region30: #{fc_gaussian_sample.1} parent=1 // pred_check
      _
    $region31: #{fc_gaussian_sample.1} parent=1 // pred_check_branch
      %162 = sbr.rel (0) target = $region33
    $region32: #{fc_gaussian_sample.1} parent=1 // pred_region
      %s164 = ssub.s32 128, 128
      %165 = vsyncadd [#allocation7], %s164
      %s167 = sshll.u32 [#allocation8], 4
      %s168 = int_to_ptr.vmem [resolvable:$true] %s167
      %170 = dma.vmem_to_hbm [thread:$0]  %s168, 128, %s6, [#allocation7]
    $region33: #{fc_gaussian_sample.1} parent=1 // pred_fallthru
      _
    // Predicated region
    $region34: #{fc_gaussian_sample.1} parent=1 // pred_check
      _
    $region35: #{fc_gaussian_sample.1} parent=1 // pred_check_branch
      %172 = sbr.rel (0) target = $region37
    $region36: #{fc_gaussian_sample.1} parent=1 // pred_region
      %173 = dma.done [#allocation4], 128
    $region37: #{fc_gaussian_sample.1} parent=1 // pred_fallthru
      _
    // Predicated region
    $region38: #{fc_gaussian_sample.1} parent=1 // pred_check
      _
    $region39: #{fc_gaussian_sample.1} parent=1 // pred_check_branch
      %175 = sbr.rel (0) target = $region41
    $region40: #{fc_gaussian_sample.1} parent=1 // pred_region
      %176 = dma.done [#allocation7], 128
    $region41: #{fc_gaussian_sample.1} parent=1 // pred_fallthru
      _
    // Predicated region
    $region42: #{fc_gaussian_sample.1} parent=1 // pred_check
      _
    $region43: #{fc_gaussian_sample.1} parent=1 // pred_check_branch
      %178 = sbr.rel (0) target = $region45
    $region44: #{fc_gaussian_sample.1} parent=1 // pred_region
      %179 = dma.done [#allocation7], 128
    $region45: #{fc_gaussian_sample.1} parent=1 // pred_fallthru
      _
    %180 = vsyncpa [#allocation3], 1
    %181 = vsyncpa [#allocation4], 1
    %182 = vsyncpa [#allocation7], 1

</llo_original>
